<compile_context>
chip_gen: v5e
topology: v5e:2x2
jax: 0.10.0
libtpu: 0.0.40
codegen_flags: <defaults>
</compile_context>

<pallas_src>
import functools
import math

import jax
import jax.numpy as jnp
from jax import lax
from jax.experimental import pallas as pl
from jax.experimental.pallas import tpu as pltpu

_VMEM_LIMIT_BYTES = 48 * 1024 * 1024  # > scoped defaults, < v7x physical 64 MiB


def _pick_tile(total: int, preferred: int, align: int) -> int:
    """Largest multiple of `align` that divides `total` and is <= preferred.

    Falls back to the full extent (always legal: block dim == array dim), so
    small / odd shapes never need host-side padding.
    """
    if total <= preferred:
        return total
    t = (preferred // align) * align
    while t >= align:
        if total % t == 0:
            return t
        t -= align
    return total


# ---------------------------------------------------------------------------
# Tiled matmul kernel (used for wq / wk / wv / wo projections).
# ---------------------------------------------------------------------------
def _matmul_kernel(x_ref, w_ref, o_ref, acc_ref):
    @pl.when(pl.program_id(2) == 0)
    def _():
        acc_ref[...] = jnp.zeros_like(acc_ref)

    acc_ref[...] += jnp.dot(x_ref[...], w_ref[...],
                            preferred_element_type=jnp.float32)

    @pl.when(pl.program_id(2) == pl.num_programs(2) - 1)
    def _():
        o_ref[...] = acc_ref[...].astype(o_ref.dtype)


def matmul(x: jax.Array, w: jax.Array) -> jax.Array:
    """y = x @ w, x: (M, K), w: (K, N)."""
    M, K = x.shape
    K2, N = w.shape
    assert K == K2
    tm = _pick_tile(M, 256, 8)
    tn = _pick_tile(N, 512, 128)
    tk = _pick_tile(K, 512, 128)
    grid = (M // tm, N // tn, K // tk)
    return pl.pallas_call(
        _matmul_kernel,
        out_shape=jax.ShapeDtypeStruct((M, N), x.dtype),
        grid_spec=pltpu.PrefetchScalarGridSpec(
            num_scalar_prefetch=0,
            grid=grid,
            in_specs=[
                pl.BlockSpec((tm, tk), lambda i, j, k: (i, k)),
                pl.BlockSpec((tk, tn), lambda i, j, k: (k, j)),
            ],
            out_specs=pl.BlockSpec((tm, tn), lambda i, j, k: (i, j)),
            scratch_shapes=[pltpu.VMEM((tm, tn), jnp.float32)]),
        compiler_params=pltpu.CompilerParams(
            dimension_semantics=("parallel", "parallel", "arbitrary"),
            vmem_limit_bytes=_VMEM_LIMIT_BYTES),
    )(x, w)


# ---------------------------------------------------------------------------
# Flash attention kernel: softmax(q k^T / sqrt(d) + mask) v with online
# softmax over the kv axis.  GQA handled via index_map (kv_head = h // n_rep).
# ---------------------------------------------------------------------------
def _flash_attn_kernel(q_ref, k_ref, v_ref, mask_ref, o_ref,
                       m_sc, l_sc, acc_sc, *, sm_scale: float):
    kv_i = pl.program_id(3)

    @pl.when(kv_i == 0)
    def _():
        m_sc[...] = jnp.full_like(m_sc, -jnp.inf)
        l_sc[...] = jnp.zeros_like(l_sc)
        acc_sc[...] = jnp.zeros_like(acc_sc)

    q = q_ref[...]                                   # (tq, D)
    k = k_ref[...]                                   # (tl, D)
    s = lax.dot_general(q, k, (((1,), (1,)), ((), ())),
                        preferred_element_type=jnp.float32)     # (tq, tl)
    s = s * sm_scale + mask_ref[...].astype(jnp.float32)

    m_prev = m_sc[...]
    m_new = jnp.maximum(m_prev, jnp.max(s, axis=-1, keepdims=True))
    alpha = jnp.exp(m_prev - m_new)
    p = jnp.exp(s - m_new)
    l_sc[...] = alpha * l_sc[...] + jnp.sum(p, axis=-1, keepdims=True)
    acc_sc[...] = alpha * acc_sc[...] + jnp.dot(
        p.astype(v_ref.dtype), v_ref[...], preferred_element_type=jnp.float32)
    m_sc[...] = m_new

    @pl.when(kv_i == pl.num_programs(3) - 1)
    def _():
        o_ref[...] = (acc_sc[...] / l_sc[...]).astype(o_ref.dtype)


def flash_attention(q: jax.Array, k: jax.Array, v: jax.Array,
                    mask: jax.Array, n_rep: int) -> jax.Array:
    """q: (B, H, S, D); k, v: (B, H // n_rep, L, D); mask: (S, L) additive."""
    B, H, S, D = q.shape
    _, KVH, L, _ = k.shape
    assert KVH * n_rep == H
    sm_scale = 1.0 / math.sqrt(D)

    tq = _pick_tile(S, 256, 8)
    tl = _pick_tile(L, 512, 128)
    grid = (B, H, S // tq, L // tl)

    return pl.pallas_call(
        functools.partial(_flash_attn_kernel, sm_scale=sm_scale),
        out_shape=jax.ShapeDtypeStruct((B, H, S, D), q.dtype),
        grid_spec=pltpu.PrefetchScalarGridSpec(
            num_scalar_prefetch=0,
            grid=grid,
            in_specs=[
                pl.BlockSpec((None, None, tq, D),
                             lambda b, h, qi, ki: (b, h, qi, 0)),
                pl.BlockSpec((None, None, tl, D),
                             lambda b, h, qi, ki: (b, h // n_rep, ki, 0)),
                pl.BlockSpec((None, None, tl, D),
                             lambda b, h, qi, ki: (b, h // n_rep, ki, 0)),
                pl.BlockSpec((tq, tl), lambda b, h, qi, ki: (qi, ki)),
            ],
            out_specs=pl.BlockSpec((None, None, tq, D),
                                   lambda b, h, qi, ki: (b, h, qi, 0)),
            scratch_shapes=[
                pltpu.VMEM((tq, 1), jnp.float32),   # running max
                pltpu.VMEM((tq, 1), jnp.float32),   # running denom
                pltpu.VMEM((tq, D), jnp.float32),   # output accumulator
            ]),
        compiler_params=pltpu.CompilerParams(
            dimension_semantics=("parallel", "parallel", "parallel",
                                 "arbitrary"),
            vmem_limit_bytes=_VMEM_LIMIT_BYTES),
    )(q, k, v, mask)


# ---------------------------------------------------------------------------
# RoPE (apply_rotary_emb) -- elementwise, done in the JAX wrapper.
# ---------------------------------------------------------------------------
def apply_rotary_emb(xq, xk, freqs_cos, freqs_sin):
    """xq: (B,S,H,D), xk: (B,S,KVH,D); freqs_*: (S, D//2)."""
    def rope(x):
        xf = x.astype(jnp.float32)
        x0 = xf[..., 0::2]
        x1 = xf[..., 1::2]
        cos = freqs_cos[None, :, None, :]
        sin = freqs_sin[None, :, None, :]
        o0 = x0 * cos - x1 * sin
        o1 = x0 * sin + x1 * cos
        out = jnp.stack([o0, o1], axis=-1).reshape(x.shape)
        return out.astype(x.dtype)
    return rope(xq), rope(xk)


# ---------------------------------------------------------------------------
# Full Attention.forward equivalent.
# ---------------------------------------------------------------------------
def attention_forward(params, x, start_pos, freqs_cos, freqs_sin, mask,
                      cache_k, cache_v, *, n_heads, n_kv_heads, head_dim):
    bsz, seqlen, dim = x.shape
    n_rep = n_heads // n_kv_heads
    cache_len = start_pos + seqlen

    x2d = x.reshape(bsz * seqlen, dim)
    xq = matmul(x2d, params["wq"]).reshape(bsz, seqlen, n_heads, head_dim)
    xk = matmul(x2d, params["wk"]).reshape(bsz, seqlen, n_kv_heads, head_dim)
    xv = matmul(x2d, params["wv"]).reshape(bsz, seqlen, n_kv_heads, head_dim)

    xq, xk = apply_rotary_emb(xq, xk, freqs_cos, freqs_sin)

    cache_k = lax.dynamic_update_slice(cache_k, xk.astype(cache_k.dtype),
                                       (0, start_pos, 0, 0))
    cache_v = lax.dynamic_update_slice(cache_v, xv.astype(cache_v.dtype),
                                       (0, start_pos, 0, 0))

    keys = cache_k[:bsz, :cache_len]        # (B, L, KVH, D)
    values = cache_v[:bsz, :cache_len]

    q = xq.transpose(0, 2, 1, 3)            # (B, H,   S, D)
    k = keys.transpose(0, 2, 1, 3)          # (B, KVH, L, D)
    v = values.transpose(0, 2, 1, 3)

    if mask is None:
        mask = jnp.zeros((seqlen, cache_len), dtype=jnp.float32)

    out = flash_attention(q, k, v, mask, n_rep)          # (B, H, S, D)
    out = out.transpose(0, 2, 1, 3).reshape(bsz * seqlen, n_heads * head_dim)
    out = matmul(out, params["wo"]).reshape(bsz, seqlen, dim)
    return out, cache_k, cache_v


# ---------------------------------------------------------------------------
# Pure-JAX reference (mirrors the torch code: repeat_kv + full softmax).
# ---------------------------------------------------------------------------
def attention_ref(params, x, start_pos, freqs_cos, freqs_sin, mask,
                  cache_k, cache_v, *, n_heads, n_kv_heads, head_dim):
    bsz, seqlen, dim = x.shape
    n_rep = n_heads // n_kv_heads
    xq = (x.reshape(bsz * seqlen, dim) @ params["wq"]).reshape(
        bsz, seqlen, n_heads, head_dim)
    xk = (x.reshape(bsz * seqlen, dim) @ params["wk"]).reshape(
        bsz, seqlen, n_kv_heads, head_dim)
    xv = (x.reshape(bsz * seqlen, dim) @ params["wv"]).reshape(
        bsz, seqlen, n_kv_heads, head_dim)
    xq, xk = apply_rotary_emb(xq, xk, freqs_cos, freqs_sin)
    cache_k = lax.dynamic_update_slice(cache_k, xk, (0, start_pos, 0, 0))
    cache_v = lax.dynamic_update_slice(cache_v, xv, (0, start_pos, 0, 0))
    keys = jnp.repeat(cache_k[:bsz, :start_pos + seqlen], n_rep, axis=2)
    values = jnp.repeat(cache_v[:bsz, :start_pos + seqlen], n_rep, axis=2)
    q = xq.transpose(0, 2, 1, 3)
    k = keys.transpose(0, 2, 1, 3)
    v = values.transpose(0, 2, 1, 3)
    scores = jnp.einsum("bhqd,bhkd->bhqk", q, k) / math.sqrt(head_dim)
    if mask is not None:
        scores = scores + mask[None, None]
    probs = jax.nn.softmax(scores.astype(jnp.float32), axis=-1).astype(q.dtype)
    out = jnp.einsum("bhqk,bhkd->bhqd", probs, v)
    out = out.transpose(0, 2, 1, 3).reshape(bsz, seqlen, -1)
    return out @ params["wo"]


def precompute_freqs(head_dim, end, theta=10000.0):
    freqs = 1.0 / (theta ** (jnp.arange(0, head_dim, 2, dtype=jnp.float32)
                             / head_dim))
    t = jnp.arange(end, dtype=jnp.float32)
    angles = jnp.outer(t, freqs)
    return jnp.cos(angles), jnp.sin(angles)


if __name__ == "__main__":
    # Small ModelArgs-consistent config: dim = n_heads * head_dim, GQA n_rep=2.
    dim, n_heads, n_kv_heads, head_dim = 128, 2, 1, 64
    max_batch_size, max_seq_len = 2, 32
    bsz, seqlen, start_pos = 2, 8, 8
    cache_len = start_pos + seqlen

    key = jax.random.PRNGKey(0)
    kx, kq, kk, kv, ko, kck, kcv = jax.random.split(key, 7)

    x = jax.random.normal(kx, (bsz, seqlen, dim), dtype=jnp.float32)
    params = {
        "wq": jax.random.normal(kq, (dim, n_heads * head_dim),
                                dtype=jnp.float32) / math.sqrt(dim),
        "wk": jax.random.normal(kk, (dim, n_kv_heads * head_dim),
                                dtype=jnp.float32) / math.sqrt(dim),
        "wv": jax.random.normal(kv, (dim, n_kv_heads * head_dim),
                                dtype=jnp.float32) / math.sqrt(dim),
        "wo": jax.random.normal(ko, (n_heads * head_dim, dim),
                                dtype=jnp.float32) / math.sqrt(dim),
    }
    # KV cache with "previous tokens" already filled in positions < start_pos.
    cache_k = 0.5 * jax.random.normal(
        kck, (max_batch_size, max_seq_len, n_kv_heads, head_dim),
        dtype=jnp.float32)
    cache_v = 0.5 * jax.random.normal(
        kcv, (max_batch_size, max_seq_len, n_kv_heads, head_dim),
        dtype=jnp.float32)

    cos_all, sin_all = precompute_freqs(head_dim, max_seq_len * 2)
    freqs_cos = cos_all[start_pos:start_pos + seqlen]
    freqs_sin = sin_all[start_pos:start_pos + seqlen]

    # Llama-style additive mask: causal over new tokens, zeros for the prefix.
    causal = jnp.triu(jnp.full((seqlen, seqlen), float("-inf"),
                               dtype=jnp.float32), k=1)
    mask = jnp.concatenate(
        [jnp.zeros((seqlen, start_pos), dtype=jnp.float32), causal], axis=1)

    out, new_ck, new_cv = attention_forward(
        params, x, start_pos, freqs_cos, freqs_sin, mask, cache_k, cache_v,
        n_heads=n_heads, n_kv_heads=n_kv_heads, head_dim=head_dim)
    out = jax.block_until_ready(out)

    ref = attention_ref(
        params, x, start_pos, freqs_cos, freqs_sin, mask, cache_k, cache_v,
        n_heads=n_heads, n_kv_heads=n_kv_heads, head_dim=head_dim)

    assert out.shape == (bsz, seqlen, dim) and out.dtype == x.dtype
    assert jnp.allclose(out, ref, atol=1e-4, rtol=1e-4)

    print("KERNEL_OK")
</pallas_src>

<mosaic_0001>
module attributes {stable_mosaic.version = 11 : i64} {
  func.func @_matmul_kernel(%arg0: i32, %arg1: i32, %arg2: i32, %arg3: memref<16x128xf32, #tpu.memory_space<vmem>>, %arg4: memref<128x128xf32, #tpu.memory_space<vmem>>, %arg5: memref<16x128xf32, #tpu.memory_space<vmem>>, %arg6: memref<16x128xf32, #tpu.memory_space<vmem>>) attributes {dimension_semantics = [#tpu.dimension_semantics<parallel>, #tpu.dimension_semantics<parallel>, #tpu.dimension_semantics<arbitrary>], iteration_bounds = array<i64: 1, 1, 1>, scalar_prefetch = 0 : i64, scratch_operands = 1 : i64, tpu.core_type = #tpu.core_type<tc>, window_params = [{transform_indices = @transform_0, window_bounds = array<i64: 16, 128>}, {transform_indices = @transform_1, window_bounds = array<i64: 128, 128>}, {transform_indices = @transform_2, window_bounds = array<i64: 16, 128>}]} {
    %c0_i32 = arith.constant 0 : i32
    %0 = arith.cmpi eq, %arg2, %c0_i32 : i32
    %1 = arith.extui %0 : i1 to i32
    %c0_i32_0 = arith.constant 0 : i32
    %2 = arith.cmpi ne, %1, %c0_i32_0 : i32
    scf.if %2 {
      %cst_10 = arith.constant 0.000000e+00 : f32
      %12 = vector.broadcast %cst_10 : f32 to vector<16x128xf32>
      %c0_11 = arith.constant 0 : index
      %c0_12 = arith.constant 0 : index
      %13 = vector.load %arg6[%c0_11, %c0_12] : memref<16x128xf32, #tpu.memory_space<vmem>>, vector<16x128xf32>
      tpu.vector_store %arg6[%c0_11, %c0_12], %12 {strides = array<i32>} : memref<16x128xf32, #tpu.memory_space<vmem>>, vector<16x128xf32>,
    } else {
    }
    %c0 = arith.constant 0 : index
    %c0_1 = arith.constant 0 : index
    %3 = vector.load %arg6[%c0, %c0_1] : memref<16x128xf32, #tpu.memory_space<vmem>>, vector<16x128xf32>
    %c0_2 = arith.constant 0 : index
    %c0_3 = arith.constant 0 : index
    %4 = vector.load %arg3[%c0_2, %c0_3] : memref<16x128xf32, #tpu.memory_space<vmem>>, vector<16x128xf32>
    %c0_4 = arith.constant 0 : index
    %c0_5 = arith.constant 0 : index
    %5 = vector.load %arg4[%c0_4, %c0_5] : memref<128x128xf32, #tpu.memory_space<vmem>>, vector<128x128xf32>
    %cst = arith.constant dense<0.000000e+00> : vector<16x128xf32>
    %6 = tpu.matmul %4, %5, %cst {dimension_numbers = #tpu.dot_dimension_numbers<[1], [0], [0], [1], [0, 0, 1, 1], [], []>} : vector<16x128xf32>, vector<128x128xf32>, vector<16x128xf32> -> vector<16x128xf32>
    %7 = arith.addf %3, %6 : vector<16x128xf32>
    %c0_6 = arith.constant 0 : index
    %c0_7 = arith.constant 0 : index
    %8 = vector.load %arg6[%c0_6, %c0_7] : memref<16x128xf32, #tpu.memory_space<vmem>>, vector<16x128xf32>
    tpu.vector_store %arg6[%c0_6, %c0_7], %7 {strides = array<i32>} : memref<16x128xf32, #tpu.memory_space<vmem>>, vector<16x128xf32>,
    %c0_i32_8 = arith.constant 0 : i32
    %9 = arith.cmpi eq, %arg2, %c0_i32_8 : i32
    %10 = arith.extui %9 : i1 to i32
    %c0_i32_9 = arith.constant 0 : i32
    %11 = arith.cmpi ne, %10, %c0_i32_9 : i32
    scf.if %11 {
      %c0_10 = arith.constant 0 : index
      %c0_11 = arith.constant 0 : index
      %12 = vector.load %arg6[%c0_10, %c0_11] : memref<16x128xf32, #tpu.memory_space<vmem>>, vector<16x128xf32>
      %c0_12 = arith.constant 0 : index
      %c0_13 = arith.constant 0 : index
      %13 = vector.load %arg5[%c0_12, %c0_13] : memref<16x128xf32, #tpu.memory_space<vmem>>, vector<16x128xf32>
      tpu.vector_store %arg5[%c0_12, %c0_13], %12 {strides = array<i32>} : memref<16x128xf32, #tpu.memory_space<vmem>>, vector<16x128xf32>,
    } else {
    }
    return
  }
  func.func @transform_0(%arg0: i32, %arg1: i32, %arg2: i32) -> (i32, i32) {
    %c0_i32 = arith.constant 0 : i32
    return %arg0, %arg2 : i32, i32
  }
  func.func @transform_1(%arg0: i32, %arg1: i32, %arg2: i32) -> (i32, i32) {
    %c0_i32 = arith.constant 0 : i32
    return %arg2, %arg1 : i32, i32
  }
  func.func @transform_2(%arg0: i32, %arg1: i32, %arg2: i32) -> (i32, i32) {
    %c0_i32 = arith.constant 0 : i32
    return %arg0, %arg1 : i32, i32
  }
}

</mosaic_0001>

<llo_original>
// kernel: tpu_custom_call.1
$region0: #{tpu_custom_call.1}
  #allocation0 [shape = 'u32[]', space=smem, size = 0x4, offset = 0x4, fixed_abs, tag = 'smem constant byte address 0x4 - core index']
  #allocation1 [shape = 'u32[72,128]{1,0:T(1,128)}', space=vmem, size = 0x9000, scoped, tag = 'internal scratch']
  #allocation2 [shape = 'f32[16,128]{1,0:T(8,128)}', space=vmem, size = 0x2000, scoped, tag = 'scratch operand']
  %s0 = inlined_call_operand.hbm [shape: f32[16,128], index: 0, kind: input, shape index: {}]
  %s1 = inlined_call_operand.hbm [shape: f32[128,128], index: 1, kind: input, shape index: {}]
  %s2 = inlined_call_operand.hbm [shape: f32[16,128], index: 2, kind: output, shape index: {}]
  %s3 = sld [smem:[#allocation0]]
  $region34: #{tpu_custom_call.1} parent=0
    _
  %s5 = ssub.s32 1, %s3
  %s6 = scalar_select 0, %s5, %s3
  $region1: #{tpu_custom_call.1} parent=0
    #allocation3 [shape = 'u8[8192]{0}', space=vmem, size = 0x2000, scoped, tag = 'input window, operand 0, single buffered']
    #allocation4 [shape = 's32[1]{0}', space=sflag, size = 0x4, scoped, tag = 'scoped memory for tpu_custom_call.1']
    #allocation5 [shape = 's32[1]{0}', space=sflag, size = 0x4, scoped, tag = 'scoped memory for tpu_custom_call.1']
    #allocation6 [shape = 'u8[65536]{0}', space=vmem, size = 0x10000, scoped, tag = 'input window, operand 1, single buffered']
    #allocation7 [shape = 's32[1]{0}', space=sflag, size = 0x4, scoped, tag = 'scoped memory for tpu_custom_call.1']
    #allocation8 [shape = 'u8[8192]{0}', space=vmem, size = 0x2000, scoped, tag = 'output window, operand 0, single buffered']
    %7 = vsyncpa [#allocation4], 0
    %8 = vsyncpa [#allocation7], 0
    %9 = vsyncpa [#allocation5], 0
    // Predicated region
    $region2: #{tpu_custom_call.1} parent=1 // pred_check
      _
    $region3: #{tpu_custom_call.1} parent=1 // pred_check_branch
      %11 = sbr.rel (0) target = $region5
    $region4: #{tpu_custom_call.1} parent=1 // pred_region
      %13 = vsyncadd [#allocation4], 0
      %s14 = sshll.u32 %s0, 4
      %s15 = int_to_ptr.hbm [resolvable:$true] %s14
      %s16 = sshll.u32 [#allocation3], 4
      %s17 = int_to_ptr.vmem [resolvable:$true] %s16
      %22 = dma.hbm_to_vmem [thread:$0]  %s15, 256, %s17, [#allocation4], 128, 128, 8
    $region5: #{tpu_custom_call.1} parent=1 // pred_fallthru
      _
    // Predicated region
    $region6: #{tpu_custom_call.1} parent=1 // pred_check
      _
    $region7: #{tpu_custom_call.1} parent=1 // pred_check_branch
      %24 = sbr.rel (0) target = $region9
    $region8: #{tpu_custom_call.1} parent=1 // pred_region
      %26 = vsyncadd [#allocation7], 0
      %s27 = sshll.u32 %s1, 4
      %s28 = int_to_ptr.hbm [resolvable:$true] %s27
      %s29 = sshll.u32 [#allocation6], 4
      %s30 = int_to_ptr.vmem [resolvable:$true] %s29
      %35 = dma.hbm_to_vmem [thread:$0]  %s28, 2048, %s30, [#allocation7], 128, 128, 8
    $region9: #{tpu_custom_call.1} parent=1 // pred_fallthru
      _
    // Predicated region
    $region10: #{tpu_custom_call.1} parent=1 // pred_check
      _
    $region11: #{tpu_custom_call.1} parent=1 // pred_check_branch
      %37 = sbr.rel (0) target = $region13
    $region12: #{tpu_custom_call.1} parent=1 // pred_region
      %39 = dma.done [#allocation4], 256
    $region13: #{tpu_custom_call.1} parent=1 // pred_fallthru
      _
    // Predicated region
    $region14: #{tpu_custom_call.1} parent=1 // pred_check
      _
    $region15: #{tpu_custom_call.1} parent=1 // pred_check_branch
      %41 = sbr.rel (0) target = $region17
    $region16: #{tpu_custom_call.1} parent=1 // pred_region
      %43 = dma.done [#allocation7], 2048
    $region17: #{tpu_custom_call.1} parent=1 // pred_fallthru
      _
    %p44 = scmp.eq.s32.totalorder 0, 0
    // Predicated region
    $region18: #{tpu_custom_call.1} parent=1 // pred_check
      %p45 = pneg %p44
    $region19: #{tpu_custom_call.1} parent=1 // pred_check_branch
      %47 = sbr.rel (%p45) target = $region21
    $region20: #{tpu_custom_call.1} parent=1 // pred_region
      %48 = vst [vmem:[#allocation2] sm:$0xff] 0.0
      %49 = vst [vmem:[#allocation2 + $0x8] sm:$0xff] 0.0
    $region21: #{tpu_custom_call.1} parent=1 // pred_fallthru
      _
    %v50 = vld [vmem:[#allocation2] sm:$0xff]
    %v51 = vld [vmem:[#allocation2 + $0x8] sm:$0xff]
    %v52 = vld [vmem:[#allocation3] sm:$0xff]
    %v53 = vld [vmem:[#allocation3 + $0x8] sm:$0xff]
    %v54 = vld [vmem:[#allocation6] sm:$0xff]
    %v55 = vld [vmem:[#allocation6 + $0x8] sm:$0xff]
    %v56 = vld [vmem:[#allocation6 + $0x10] sm:$0xff]
    %v57 = vld [vmem:[#allocation6 + $0x18] sm:$0xff]
    %v58 = vld [vmem:[#allocation6 + $0x20] sm:$0xff]
    %v59 = vld [vmem:[#allocation6 + $0x28] sm:$0xff]
    %v60 = vld [vmem:[#allocation6 + $0x30] sm:$0xff]
    %v61 = vld [vmem:[#allocation6 + $0x38] sm:$0xff]
    %v62 = vld [vmem:[#allocation6 + $0x40] sm:$0xff]
    %v63 = vld [vmem:[#allocation6 + $0x48] sm:$0xff]
    %v64 = vld [vmem:[#allocation6 + $0x50] sm:$0xff]
    %v65 = vld [vmem:[#allocation6 + $0x58] sm:$0xff]
    %v66 = vld [vmem:[#allocation6 + $0x60] sm:$0xff]
    %v67 = vld [vmem:[#allocation6 + $0x68] sm:$0xff]
    %v68 = vld [vmem:[#allocation6 + $0x70] sm:$0xff]
    %v69 = vld [vmem:[#allocation6 + $0x78] sm:$0xff]
    %70 = vmatpush.msra.mxu0 %v69
    %71 = vmatpush.msra.mxu0 %v68
    %72 = vmatpush.msra.mxu0 %v67
    %73 = vmatpush.msra.mxu0 %v66
    %74 = vmatpush.msra.mxu0 %v65
    %75 = vmatpush.msra.mxu0 %v64
    %76 = vmatpush.msra.mxu0 %v63
    %77 = vmatpush.msra.mxu0 %v62
    %78 = vmatpush.msra.mxu0 %v61
    %79 = vmatpush.msra.mxu0 %v60
    %80 = vmatpush.msra.mxu0 %v59
    %81 = vmatpush.msra.mxu0 %v58
    %82 = vmatpush.msra.mxu0 %v57
    %83 = vmatpush.msra.mxu0 %v56
    %84 = vmatpush.msra.mxu0 %v55
    %85 = vmatpush.msra.mxu0 %v54
    %86 = vmatmul.f32.gmra.mxu0 %v52
    %v87 = vpop.f32.mrf.mxu0
    %v88 = vadd.f32 0.0, %v87
    %89 = vmatmul.f32.gmra.mxu0 %v53
    %v90 = vpop.f32.mrf.mxu0
    %v91 = vadd.f32 0.0, %v90
    %92 = vdwg.mxu0
    %v93 = vadd.f32 %v50, %v88
    %v94 = vadd.f32 %v51, %v91
    %95 = vst [vmem:[#allocation2] sm:$0xff] %v93
    %96 = vst [vmem:[#allocation2 + $0x8] sm:$0xff] %v94
    // Predicated region
    $region22: #{tpu_custom_call.1} parent=1 // pred_check
      %p97 = pneg %p44
    $region23: #{tpu_custom_call.1} parent=1 // pred_check_branch
      %99 = sbr.rel (%p97) target = $region25
    $region24: #{tpu_custom_call.1} parent=1 // pred_region
      %v100 = vld [vmem:[#allocation2] sm:$0xff]
      %v101 = vld [vmem:[#allocation2 + $0x8] sm:$0xff]
      %102 = vst [vmem:[#allocation8] sm:$0xff] %v100
      %103 = vst [vmem:[#allocation8 + $0x8] sm:$0xff] %v101
    $region25: #{tpu_custom_call.1} parent=1 // pred_fallthru
      _
    // Predicated region
    $region26: #{tpu_custom_call.1} parent=1 // pred_check
      _
    $region27: #{tpu_custom_call.1} parent=1 // pred_check_branch
      %105 = sbr.rel (0) target = $region29
    $region28: #{tpu_custom_call.1} parent=1 // pred_region
      %107 = vsyncadd [#allocation5], 0
      %s108 = sshll.u32 [#allocation8], 4
      %s109 = int_to_ptr.vmem [resolvable:$true] %s108
      %s110 = sshll.u32 %s2, 4
      %s111 = int_to_ptr.hbm [resolvable:$true] %s110
      %116 = dma.vmem_to_hbm [thread:$0]  %s109, 256, %s111, [#allocation5], 128, 128, 8
    $region29: #{tpu_custom_call.1} parent=1 // pred_fallthru
      _
    // Predicated region
    $region30: #{tpu_custom_call.1} parent=1 // pred_check
      _
    $region31: #{tpu_custom_call.1} parent=1 // pred_check_branch
      %118 = sbr.rel (0) target = $region33
    $region32: #{tpu_custom_call.1} parent=1 // pred_region
      %120 = dma.done [#allocation5], 256
    $region33: #{tpu_custom_call.1} parent=1 // pred_fallthru
      _
    %121 = vsyncpa [#allocation4], 1
    %122 = vsyncpa [#allocation7], 1
    %123 = vsyncpa [#allocation5], 1

</llo_original>
